<compile_context>
chip_gen: v6e
topology: v6e:2x2x1
jax: 0.10.0
libtpu: 0.0.40
codegen_flags: <defaults>
</compile_context>

<pallas_src>
import functools

import numpy as np
import jax
import jax.numpy as jnp
from jax.experimental import pallas as pl
from jax.experimental.pallas import tpu as pltpu


def _conv_tile(xw, w_ref, b_ref, *, K, stride, tile_L):
    """Conv1d on one tile.

    xw:    (C_in, win) f32 input window, win = (tile_L-1)*stride + K
    w_ref: (K, C_out, C_in) weight ref
    b_ref: (C_out, 1) conv bias ref
    returns (C_out, tile_L) f32 (lane-dense: tile_L on lanes).
    """
    C_out = w_ref.shape[1]
    acc = jnp.zeros((C_out, tile_L), jnp.float32)
    for k in range(K):  # K is small and static -> unrolled
        xk = jax.lax.slice_in_dim(
            xw, k, k + (tile_L - 1) * stride + 1, stride=stride, axis=1)
        acc = acc + jnp.dot(w_ref[k, :, :], xk,
                            preferred_element_type=jnp.float32)
    return acc + b_ref[...]


def _stats_kernel(xw_ref, w_ref, b_ref, sum_ref, sumsq_ref, *,
                  K, stride, tile_L, L_out):
    """Phase 1: accumulate per-channel sum and sum-of-squares of conv output."""
    n = pl.program_id(0)
    t = pl.program_id(1)

    @pl.when(jnp.logical_and(n == 0, t == 0))
    def _init():
        sum_ref[...] = jnp.zeros_like(sum_ref)
        sumsq_ref[...] = jnp.zeros_like(sumsq_ref)

    xw = xw_ref[0, 0, :, :].astype(jnp.float32)
    y = _conv_tile(xw, w_ref, b_ref, K=K, stride=stride, tile_L=tile_L)

    # Mask padded output columns (only active when L_out % tile_L != 0).
    col = jax.lax.broadcasted_iota(jnp.int32, (1, tile_L), 1) + t * tile_L
    valid = (col < L_out).astype(jnp.float32)
    yv = y * valid

    sum_ref[...] += jnp.sum(yv, axis=1, keepdims=True)
    sumsq_ref[...] += jnp.sum(yv * yv, axis=1, keepdims=True)


def _norm_kernel(xw_ref, w_ref, b_ref, scale_ref, shift_ref, bits_ref, o_ref, *,
                 K, stride, tile_L, activation, keep_thresh, inv_keep,
                 drop_mode):
    """Phase 2: conv (recomputed) + folded BN affine + activation + dropout."""
    xw = xw_ref[0, 0, :, :].astype(jnp.float32)
    y = _conv_tile(xw, w_ref, b_ref, K=K, stride=stride, tile_L=tile_L)

    # Folded BatchNorm: scale = gamma*rsqrt(var+eps), shift = beta - mean*scale.
    y = y * scale_ref[...] + shift_ref[...]

    if activation == "relu":
        y = jnp.maximum(y, 0.0)
    elif activation == "tanh":
        y = jnp.tanh(y)

    if drop_mode == "all":          # dropout_p >= 1.0
        y = jnp.zeros_like(y)
    elif drop_mode == "some":       # 0 < dropout_p < 1: integer threshold
        keep = bits_ref[0, :, :] >= jnp.uint32(keep_thresh)
        y = jnp.where(keep, y * jnp.float32(inv_keep), 0.0)

    o_ref[0, :, :] = y.astype(o_ref.dtype)


def cbad_forward(x, weight, bias, gamma, beta, *, stride, padding, dropout_p,
                 activation="relu", seed=0, eps=1e-5, tile_l=512):
    """x: (N, C_in, L) NCL.  weight: (C_out, C_in, K).  Returns (N, C_out, L_out)."""
    N, C_in, L = x.shape
    C_out, _, K = weight.shape
    L_out = (L + 2 * padding - K) // stride + 1
    assert L_out > 0

    # Length tiling (per-tile windows carry a (K-1)*stride halo).
    tile_L = int(min(L_out, tile_l))
    n_t = -(-L_out // tile_L)
    L_out_p = n_t * tile_L
    win = (tile_L - 1) * stride + K

    # Pad: `padding` zeros on the left, enough on the right so every window
    # (including the garbage tail of the last tile) stays in bounds.
    need = (n_t - 1) * tile_L * stride + win
    right_pad = max(need - (L + padding), padding)
    x_pad = jnp.pad(x.astype(jnp.float32),
                    ((0, 0), (0, 0), (padding, right_pad)))

    # Per-tile overlapping input windows: (N, n_t, C_in, win).
    starts = np.arange(n_t) * (tile_L * stride)
    idx = starts[:, None] + np.arange(win)[None, :]          # (n_t, win)
    xw = x_pad[:, :, idx]                                    # (N, C_in, n_t, win)
    xw = jnp.transpose(xw, (0, 2, 1, 3))                     # (N, n_t, C_in, win)

    w_t = jnp.transpose(weight.astype(jnp.float32), (2, 0, 1))   # (K, C_out, C_in)
    b_col = bias.astype(jnp.float32).reshape(C_out, 1)

    grid = (N, n_t)

    # ---------------- Phase 1: global batch statistics ----------------
    stats_kernel = functools.partial(
        _stats_kernel, K=K, stride=stride, tile_L=tile_L, L_out=L_out)
    sum_, sumsq = pl.pallas_call(
        stats_kernel,
        out_shape=(jax.ShapeDtypeStruct((C_out, 1), jnp.float32),
                   jax.ShapeDtypeStruct((C_out, 1), jnp.float32)),
        grid=grid,
        in_specs=[
            pl.BlockSpec((1, 1, C_in, win), lambda n, t: (n, t, 0, 0)),
            pl.BlockSpec((K, C_out, C_in), lambda n, t: (0, 0, 0)),
            pl.BlockSpec((C_out, 1), lambda n, t: (0, 0)),
        ],
        out_specs=[
            pl.BlockSpec((C_out, 1), lambda n, t: (0, 0)),
            pl.BlockSpec((C_out, 1), lambda n, t: (0, 0)),
        ],
        compiler_params=pltpu.CompilerParams(
            dimension_semantics=("arbitrary", "arbitrary")),
    )(xw, w_t, b_col)

    M = N * L_out
    mean = sum_ / jnp.float32(M)
    var = jnp.maximum(sumsq / jnp.float32(M) - mean * mean, 0.0)  # biased var
    scale = gamma.astype(jnp.float32).reshape(C_out, 1) * jax.lax.rsqrt(var + eps)
    shift = beta.astype(jnp.float32).reshape(C_out, 1) - mean * scale

    # ---------------- Dropout randomness (host bits, kernel threshold) -------
    p = float(dropout_p)
    if p >= 1.0:
        drop_mode, keep_thresh, inv_keep = "all", 0, 0.0
        bits = jnp.zeros((N, C_out, L_out_p), dtype=jnp.uint32)
    elif p > 0.0:
        drop_mode = "some"
        keep_thresh = min(int(round(p * 2.0 ** 32)), 2 ** 32 - 1)
        inv_keep = 1.0 / (1.0 - p)
        bits = jax.random.bits(jax.random.PRNGKey(seed),
                               (N, C_out, L_out_p), dtype=jnp.uint32)
    else:
        drop_mode, keep_thresh, inv_keep = "none", 0, 1.0
        bits = jnp.zeros((N, C_out, L_out_p), dtype=jnp.uint32)

    # ---------------- Phase 2: normalize + activation + dropout --------------
    norm_kernel = functools.partial(
        _norm_kernel, K=K, stride=stride, tile_L=tile_L, activation=activation,
        keep_thresh=keep_thresh, inv_keep=inv_keep, drop_mode=drop_mode)
    out_p = pl.pallas_call(
        norm_kernel,
        out_shape=jax.ShapeDtypeStruct((N, C_out, L_out_p), jnp.float32),
        grid=grid,
        in_specs=[
            pl.BlockSpec((1, 1, C_in, win), lambda n, t: (n, t, 0, 0)),
            pl.BlockSpec((K, C_out, C_in), lambda n, t: (0, 0, 0)),
            pl.BlockSpec((C_out, 1), lambda n, t: (0, 0)),
            pl.BlockSpec((C_out, 1), lambda n, t: (0, 0)),
            pl.BlockSpec((C_out, 1), lambda n, t: (0, 0)),
            pl.BlockSpec((1, C_out, tile_L), lambda n, t: (n, 0, t)),
        ],
        out_specs=pl.BlockSpec((1, C_out, tile_L), lambda n, t: (n, 0, t)),
        compiler_params=pltpu.CompilerParams(
            dimension_semantics=("parallel", "parallel")),
    )(xw, w_t, b_col, scale, shift, bits)

    return out_p[:, :, :L_out]


def _reference_no_dropout(x, weight, bias, gamma, beta, *, stride, padding,
                          eps=1e-5):
    """Pure-JAX reference: Conv1d -> training-mode BN -> ReLU (no dropout)."""
    y = jax.lax.conv_general_dilated(
        x, weight, window_strides=(stride,), padding=[(padding, padding)],
        dimension_numbers=("NCH", "OIH", "NCH"))
    y = y + bias[None, :, None]
    mean = jnp.mean(y, axis=(0, 2), keepdims=True)
    var = jnp.mean((y - mean) ** 2, axis=(0, 2), keepdims=True)
    y = (y - mean) * jax.lax.rsqrt(var + eps)
    y = y * gamma[None, :, None] + beta[None, :, None]
    return jnp.maximum(y, 0.0)


if __name__ == "__main__":
    # CBAD(in_dim=4, out_dim=8, kernel_size=3, stride=1, padding=1,
    #      bias=True, activation='relu', dropout=0.5)
    N, C_in, L = 2, 4, 16
    C_out, K, stride, padding = 8, 3, 1, 1
    dropout_p = 0.5

    key = jax.random.PRNGKey(0)
    kx, kw, kb, kg, kbe = jax.random.split(key, 5)

    x = jax.random.normal(kx, (N, C_in, L), dtype=jnp.float32)
    weight = jax.random.normal(kw, (C_out, C_in, K), dtype=jnp.float32) * 0.3
    bias = jax.random.normal(kb, (C_out,), dtype=jnp.float32) * 0.1
    gamma = 1.0 + 0.1 * jax.random.normal(kg, (C_out,), dtype=jnp.float32)
    beta = 0.1 * jax.random.normal(kbe, (C_out,), dtype=jnp.float32)

    L_out = (L + 2 * padding - K) // stride + 1

    # Correctness sanity check against a pure-JAX reference (dropout disabled
    # so the comparison is deterministic; loose tolerance for MXU precision).
    out_nodrop = cbad_forward(x, weight, bias, gamma, beta, stride=stride,
                              padding=padding, dropout_p=0.0,
                              activation="relu", seed=0)
    ref = _reference_no_dropout(x, weight, bias, gamma, beta, stride=stride,
                                padding=padding)
    jax.block_until_ready(out_nodrop)
    assert out_nodrop.shape == (N, C_out, L_out), out_nodrop.shape
    assert bool(jnp.all(jnp.abs(out_nodrop - ref) <= 2e-2)), "mismatch vs ref"

    # Full forward with dropout active (training semantics).
    out = cbad_forward(x, weight, bias, gamma, beta, stride=stride,
                       padding=padding, dropout_p=dropout_p,
                       activation="relu", seed=0)
    jax.block_until_ready(out)
    assert out.shape == (N, C_out, L_out), out.shape
    assert bool(jnp.all(jnp.isfinite(out)))
    print("KERNEL_OK")
</pallas_src>

<mosaic_0001>
module attributes {stable_mosaic.version = 11 : i64} {
  func.func @_stats_kernel(%arg0: i32, %arg1: i32, %arg2: memref<1x1x4x18xf32, #tpu.memory_space<vmem>>, %arg3: memref<3x8x4xf32, #tpu.memory_space<vmem>>, %arg4: memref<8x1xf32, #tpu.memory_space<vmem>>, %arg5: memref<8x1xf32, #tpu.memory_space<vmem>>, %arg6: memref<8x1xf32, #tpu.memory_space<vmem>>) attributes {dimension_semantics = [#tpu.dimension_semantics<arbitrary>, #tpu.dimension_semantics<arbitrary>], iteration_bounds = array<i64: 2, 1>, scalar_prefetch = 0 : i64, scratch_operands = 0 : i64, tpu.core_type = #tpu.core_type<tc>, window_params = [{transform_indices = @transform_0, window_bounds = array<i64: 1, 1, 4, 18>}, {pipeline_mode = #tpu.pipeline_mode<synchronous>, transform_indices = @transform_1, window_bounds = array<i64: 3, 8, 4>}, {pipeline_mode = #tpu.pipeline_mode<synchronous>, transform_indices = @transform_2, window_bounds = array<i64: 8, 1>}, {pipeline_mode = #tpu.pipeline_mode<synchronous>, transform_indices = @transform_3, window_bounds = array<i64: 8, 1>}, {pipeline_mode = #tpu.pipeline_mode<synchronous>, transform_indices = @transform_4, window_bounds = array<i64: 8, 1>}]} {
    %c0_i32 = arith.constant 0 : i32
    %0 = arith.cmpi eq, %arg0, %c0_i32 : i32
    %c0_i32_0 = arith.constant 0 : i32
    %1 = arith.cmpi eq, %arg1, %c0_i32_0 : i32
    %2 = arith.andi %0, %1 : i1
    %3 = arith.extui %2 : i1 to i32
    %c0_i32_1 = arith.constant 0 : i32
    %4 = arith.cmpi ne, %3, %c0_i32_1 : i32
    scf.if %4 {
      %cst_28 = arith.constant 0.000000e+00 : f32
      %47 = vector.broadcast %cst_28 : f32 to vector<8x1xf32>
      %c0_29 = arith.constant 0 : index
      %c0_30 = arith.constant 0 : index
      %48 = vector.load %arg5[%c0_29, %c0_30] : memref<8x1xf32, #tpu.memory_space<vmem>>, vector<8x1xf32>
      tpu.vector_store %arg5[%c0_29, %c0_30], %47 {strides = array<i32>} : memref<8x1xf32, #tpu.memory_space<vmem>>, vector<8x1xf32>,
      %cst_31 = arith.constant 0.000000e+00 : f32
      %49 = vector.broadcast %cst_31 : f32 to vector<8x1xf32>
      %c0_32 = arith.constant 0 : index
      %c0_33 = arith.constant 0 : index
      %50 = vector.load %arg6[%c0_32, %c0_33] : memref<8x1xf32, #tpu.memory_space<vmem>>, vector<8x1xf32>
      tpu.vector_store %arg6[%c0_32, %c0_33], %49 {strides = array<i32>} : memref<8x1xf32, #tpu.memory_space<vmem>>, vector<8x1xf32>,
    } else {
    }
    %c0 = arith.constant 0 : index
    %c0_2 = arith.constant 0 : index
    %c0_3 = arith.constant 0 : index
    %c0_4 = arith.constant 0 : index
    %5 = vector.load %arg2[%c0, %c0_2, %c0_3, %c0_4] : memref<1x1x4x18xf32, #tpu.memory_space<vmem>>, vector<1x1x4x18xf32>
    %6 = vector.shape_cast %5 : vector<1x1x4x18xf32> to vector<4x18xf32>
    %cst = arith.constant 0.000000e+00 : f32
    %7 = vector.broadcast %cst : f32 to vector<8x16xf32>
    %8 = vector.extract_strided_slice %6 {offsets = [0, 0], sizes = [4, 16], strides = [1, 1]} : vector<4x18xf32> to vector<4x16xf32>
    %c0_5 = arith.constant 0 : index
    %c0_6 = arith.constant 0 : index
    %c0_7 = arith.constant 0 : index
    %9 = vector.load %arg3[%c0_5, %c0_6, %c0_7] : memref<3x8x4xf32, #tpu.memory_space<vmem>>, vector<1x8x4xf32>
    %10 = vector.shape_cast %9 : vector<1x8x4xf32> to vector<8x4xf32>
    %cst_8 = arith.constant dense<0.000000e+00> : vector<8x16xf32>
    %11 = tpu.matmul %10, %8, %cst_8 {dimension_numbers = #tpu.dot_dimension_numbers<[1], [0], [0], [1], [0, 0, 1, 1], [], []>} : vector<8x4xf32>, vector<4x16xf32>, vector<8x16xf32> -> vector<8x16xf32>
    %12 = arith.addf %7, %11 : vector<8x16xf32>
    %13 = vector.extract_strided_slice %6 {offsets = [0, 1], sizes = [4, 16], strides = [1, 1]} : vector<4x18xf32> to vector<4x16xf32>
    %c1 = arith.constant 1 : index
    %c0_9 = arith.constant 0 : index
    %c0_10 = arith.constant 0 : index
    %14 = vector.load %arg3[%c1, %c0_9, %c0_10] : memref<3x8x4xf32, #tpu.memory_space<vmem>>, vector<1x8x4xf32>
    %15 = vector.shape_cast %14 : vector<1x8x4xf32> to vector<8x4xf32>
    %cst_11 = arith.constant dense<0.000000e+00> : vector<8x16xf32>
    %16 = tpu.matmul %15, %13, %cst_11 {dimension_numbers = #tpu.dot_dimension_numbers<[1], [0], [0], [1], [0, 0, 1, 1], [], []>} : vector<8x4xf32>, vector<4x16xf32>, vector<8x16xf32> -> vector<8x16xf32>
    %17 = arith.addf %12, %16 : vector<8x16xf32>
    %18 = vector.extract_strided_slice %6 {offsets = [0, 2], sizes = [4, 16], strides = [1, 1]} : vector<4x18xf32> to vector<4x16xf32>
    %c2 = arith.constant 2 : index
    %c0_12 = arith.constant 0 : index
    %c0_13 = arith.constant 0 : index
    %19 = vector.load %arg3[%c2, %c0_12, %c0_13] : memref<3x8x4xf32, #tpu.memory_space<vmem>>, vector<1x8x4xf32>
    %20 = vector.shape_cast %19 : vector<1x8x4xf32> to vector<8x4xf32>
    %cst_14 = arith.constant dense<0.000000e+00> : vector<8x16xf32>
    %21 = tpu.matmul %20, %18, %cst_14 {dimension_numbers = #tpu.dot_dimension_numbers<[1], [0], [0], [1], [0, 0, 1, 1], [], []>} : vector<8x4xf32>, vector<4x16xf32>, vector<8x16xf32> -> vector<8x16xf32>
    %22 = arith.addf %17, %21 : vector<8x16xf32>
    %c0_15 = arith.constant 0 : index
    %c0_16 = arith.constant 0 : index
    %23 = vector.load %arg4[%c0_15, %c0_16] : memref<8x1xf32, #tpu.memory_space<vmem>>, vector<8x1xf32>
    %24 = vector.broadcast %23 : vector<8x1xf32> to vector<8x16xf32>
    %25 = arith.addf %22, %24 : vector<8x16xf32>
    %26 = tpu.iota {dimensions = array<i32: 1>} : vector<1x16xi32>
    %c16_i32 = arith.constant 16 : i32
    %27 = arith.muli %arg1, %c16_i32 : i32
    %28 = vector.broadcast %27 : i32 to vector<1x16xi32>
    %29 = arith.addi %26, %28 : vector<1x16xi32>
    %c16_i32_17 = arith.constant 16 : i32
    %30 = vector.broadcast %c16_i32_17 : i32 to vector<1x16xi32>
    %31 = arith.cmpi slt, %29, %30 : vector<1x16xi32>
    %32 = arith.extui %31 : vector<1x16xi1> to vector<1x16xi32>
    %33 = arith.sitofp %32 : vector<1x16xi32> to vector<1x16xf32>
    %34 = vector.broadcast %33 : vector<1x16xf32> to vector<8x16xf32>
    %35 = arith.mulf %25, %34 : vector<8x16xf32>
    %c0_18 = arith.constant 0 : index
    %c0_19 = arith.constant 0 : index
    %36 = vector.load %arg5[%c0_18, %c0_19] : memref<8x1xf32, #tpu.memory_space<vmem>>, vector<8x1xf32>
    %cst_20 = arith.constant dense<0.000000e+00> : vector<8xf32>
    %37 = vector.multi_reduction <add>, %35, %cst_20 [1] : vector<8x16xf32> to vector<8xf32>
    %38 = vector.shape_cast %37 : vector<8xf32> to vector<8x1xf32>
    %39 = arith.addf %36, %38 : vector<8x1xf32>
    %c0_21 = arith.constant 0 : index
    %c0_22 = arith.constant 0 : index
    %40 = vector.load %arg5[%c0_21, %c0_22] : memref<8x1xf32, #tpu.memory_space<vmem>>, vector<8x1xf32>
    tpu.vector_store %arg5[%c0_21, %c0_22], %39 {strides = array<i32>} : memref<8x1xf32, #tpu.memory_space<vmem>>, vector<8x1xf32>,
    %c0_23 = arith.constant 0 : index
    %c0_24 = arith.constant 0 : index
    %41 = vector.load %arg6[%c0_23, %c0_24] : memref<8x1xf32, #tpu.memory_space<vmem>>, vector<8x1xf32>
    %42 = arith.mulf %35, %35 : vector<8x16xf32>
    %cst_25 = arith.constant dense<0.000000e+00> : vector<8xf32>
    %43 = vector.multi_reduction <add>, %42, %cst_25 [1] : vector<8x16xf32> to vector<8xf32>
    %44 = vector.shape_cast %43 : vector<8xf32> to vector<8x1xf32>
    %45 = arith.addf %41, %44 : vector<8x1xf32>
    %c0_26 = arith.constant 0 : index
    %c0_27 = arith.constant 0 : index
    %46 = vector.load %arg6[%c0_26, %c0_27] : memref<8x1xf32, #tpu.memory_space<vmem>>, vector<8x1xf32>
    tpu.vector_store %arg6[%c0_26, %c0_27], %45 {strides = array<i32>} : memref<8x1xf32, #tpu.memory_space<vmem>>, vector<8x1xf32>,
    return
  }
  func.func @transform_0(%arg0: i32, %arg1: i32) -> (i32, i32, i32, i32) {
    %c0_i32 = arith.constant 0 : i32
    %c0_i32_0 = arith.constant 0 : i32
    %c0_i32_1 = arith.constant 0 : i32
    return %arg0, %arg1, %c0_i32, %c0_i32_0 : i32, i32, i32, i32
  }
  func.func @transform_1(%arg0: i32, %arg1: i32) -> (i32, i32, i32) {
    %c0_i32 = arith.constant 0 : i32
    %c0_i32_0 = arith.constant 0 : i32
    %c0_i32_1 = arith.constant 0 : i32
    %c0_i32_2 = arith.constant 0 : i32
    return %c0_i32, %c0_i32_0, %c0_i32_1 : i32, i32, i32
  }
  func.func @transform_2(%arg0: i32, %arg1: i32) -> (i32, i32) {
    %c0_i32 = arith.constant 0 : i32
    %c0_i32_0 = arith.constant 0 : i32
    %c0_i32_1 = arith.constant 0 : i32
    return %c0_i32, %c0_i32_0 : i32, i32
  }
  func.func @transform_3(%arg0: i32, %arg1: i32) -> (i32, i32) {
    %c0_i32 = arith.constant 0 : i32
    %c0_i32_0 = arith.constant 0 : i32
    %c0_i32_1 = arith.constant 0 : i32
    return %c0_i32, %c0_i32_0 : i32, i32
  }
  func.func @transform_4(%arg0: i32, %arg1: i32) -> (i32, i32) {
    %c0_i32 = arith.constant 0 : i32
    %c0_i32_0 = arith.constant 0 : i32
    %c0_i32_1 = arith.constant 0 : i32
    return %c0_i32, %c0_i32_0 : i32, i32
  }
}

</mosaic_0001>

<llo_original>
// kernel: tpu_custom_call.1
$region0: #{tpu_custom_call.1}
  #allocation0 [shape = 'u32[]', space=smem, size = 0x4, offset = 0x4, fixed_abs, tag = 'smem constant byte address 0x4 - core index']
  #allocation1 [shape = 'u32[144,128]{1,0:T(1,128)}', space=vmem, size = 0x12000, scoped, tag = 'internal scratch']
  %s0 = inlined_call_operand.vmem [shape: f32[2,1,4,18], index: 0, kind: input, shape index: {}]
  %s1 = inlined_call_operand.vmem [shape: f32[3,8,4], index: 1, kind: input, shape index: {}]
  %s2 = inlined_call_operand.vmem [shape: f32[8,1], index: 2, kind: input, shape index: {}]
  %s3 = inlined_call_operand.vmem [shape: f32[8,1], index: 3, kind: output, shape index: {0}]
  %s4 = inlined_call_operand.vmem [shape: f32[8,1], index: 4, kind: output, shape index: {1}]
  %5 = xla_tuple %s3, %s4
  %s6 = sld [smem:[#allocation0]]
  $region57: #{tpu_custom_call.1} parent=0
    _
  %s8 = ssub.s32 1, %s6
  %s9 = scalar_select 0, %s8, %s6
  loop: start=0, step=1, limit=4
  $region2: #{tpu_custom_call.1} parent=0 // loop_pre_header
    _
  $region3: #{tpu_custom_call.1} parent=0 // loop_header
    %s11 = sphi 0, %s15
    %p12 = scmp.ge.s32.totalorder %s11, 4
    %s18 = sphi 0, %s30
    %s19 = sphi 0, %s26
    %s20 = sphi 0, %s18
    %s21 = sphi 0, %s19
    %s22 = sphi 0, %s20
    %s23 = sphi 0, %s21
    %s35 = sphi 0, %s37
    %s38 = sphi 0, %s35
    %s39 = sphi 0, %s38
    %s55 = sphi 0, %s39
    %s59 = sphi 0, %s59
    %s61 = sphi 0, %s59
    %s62 = sphi 0, %s61
    %s76 = sphi 0, %s62
    %s80 = sphi 0, %s80
    %s82 = sphi 0, %s80
    %s83 = sphi 0, %s82
    %s97 = sphi 0, %s83
    %s101 = sphi 0, %s101
    %s103 = sphi 0, %s101
    %s104 = sphi 0, %s103
    %s118 = sphi 0, %s104
    %s122 = sphi 0, %s122
    %s124 = sphi 0, %s122
    %s125 = sphi 0, %s124
    %s139 = sphi 0, %s125
  $region4: #{tpu_custom_call.1} parent=0 // loop_header_branch
    %14 = sbr.rel (%p12) target = $region8
  $region5: #{tpu_custom_call.1} parent=0 // loop_body
    %s16 = ssub.s32 %s11, 1
    %s17 = ssub.s32 %s11, 2
    %s24 = sadd.s32 1, %s19
    %p25 = scmp.ge.s32.totalorder %s24, 1
    %s26 = scalar_select %p25, 0, %s24
    %s27 = sadd.s32 1, %s18
    %s28 = scalar_select %p25, %s27, %s18
    %p29 = scmp.ge.s32.totalorder %s28, 2
    %s30 = scalar_select %p29, 0, %s28
    %s31 = ssub.s32 %s18, %s30
    %s32 = ssub.s32 %s19, %s26
    %s33 = sor.u32 %s31, %s32
    %p34 = scmp.eq.s32.totalorder %s33, 0
    %s36 = sadd.s32 %s35, 1
    %s37 = scalar_select %p34, %s35, %s36
    %p40 = pneg %p34
    %p41 = scmp.eq.s32.totalorder %s11, 1
    %p42 = por %p40, %p41
    %p43 = scmp.ne.s32.totalorder %s35, %s38
    %p44 = scmp.eq.s32.totalorder %s11, 0
    %p45 = por %p43, %p44
    %p46 = scmp.ne.s32.totalorder %s35, %s38
    %p47 = scmp.eq.s32.totalorder %s16, 1
    %p48 = por %p46, %p47
    %p49 = scmp.ne.s32.totalorder %s38, %s39
    %p50 = scmp.eq.s32.totalorder %s16, 0
    %p51 = por %p49, %p50
    %p52 = scmp.ne.s32.totalorder %s38, %s39
    %p53 = scmp.eq.s32.totalorder %s17, 1
    %p54 = por %p52, %p53
    %p56 = scmp.ne.s32.totalorder %s39, %s55
    %p57 = scmp.eq.s32.totalorder %s17, 0
    %p58 = por %p56, %p57
    %s60 = sadd.s32 %s59, 1
    %p63 = scmp.eq.s32.totalorder %s11, 1
    %p64 = scmp.ne.s32.totalorder %s59, %s61
    %p65 = scmp.eq.s32.totalorder %s11, 0
    %p66 = por %p64, %p65
    %p67 = scmp.ne.s32.totalorder %s59, %s61
    %p68 = scmp.eq.s32.totalorder %s16, 1
    %p69 = por %p67, %p68
    %p70 = scmp.ne.s32.totalorder %s61, %s62
    %p71 = scmp.eq.s32.totalorder %s16, 0
    %p72 = por %p70, %p71
    %p73 = scmp.ne.s32.totalorder %s61, %s62
    %p74 = scmp.eq.s32.totalorder %s17, 1
    %p75 = por %p73, %p74
    %p77 = scmp.ne.s32.totalorder %s62, %s76
    %p78 = scmp.eq.s32.totalorder %s17, 0
    %p79 = por %p77, %p78
    %s81 = sadd.s32 %s80, 1
    %p84 = scmp.eq.s32.totalorder %s11, 1
    %p85 = scmp.ne.s32.totalorder %s80, %s82
    %p86 = scmp.eq.s32.totalorder %s11, 0
    %p87 = por %p85, %p86
    %p88 = scmp.ne.s32.totalorder %s80, %s82
    %p89 = scmp.eq.s32.totalorder %s16, 1
    %p90 = por %p88, %p89
    %p91 = scmp.ne.s32.totalorder %s82, %s83
    %p92 = scmp.eq.s32.totalorder %s16, 0
    %p93 = por %p91, %p92
    %p94 = scmp.ne.s32.totalorder %s82, %s83
    %p95 = scmp.eq.s32.totalorder %s17, 1
    %p96 = por %p94, %p95
    %p98 = scmp.ne.s32.totalorder %s83, %s97
    %p99 = scmp.eq.s32.totalorder %s17, 0
    %p100 = por %p98, %p99
    %s102 = sadd.s32 %s101, 1
    %p105 = scmp.eq.s32.totalorder %s11, 1
    %p106 = scmp.ne.s32.totalorder %s101, %s103
    %p107 = scmp.eq.s32.totalorder %s11, 0
    %p108 = por %p106, %p107
    %p109 = scmp.ne.s32.totalorder %s101, %s103
    %p110 = scmp.eq.s32.totalorder %s16, 1
    %p111 = por %p109, %p110
    %p112 = scmp.ne.s32.totalorder %s103, %s104
    %p113 = scmp.eq.s32.totalorder %s16, 0
    %p114 = por %p112, %p113
    %p115 = scmp.ne.s32.totalorder %s103, %s104
    %p116 = scmp.eq.s32.totalorder %s17, 1
    %p117 = por %p115, %p116
    %p119 = scmp.ne.s32.totalorder %s104, %s118
    %p120 = scmp.eq.s32.totalorder %s17, 0
    %p121 = por %p119, %p120
    %s123 = sadd.s32 %s122, 1
    %p126 = scmp.eq.s32.totalorder %s11, 1
    %p127 = scmp.ne.s32.totalorder %s122, %s124
    %p128 = scmp.eq.s32.totalorder %s11, 0
    %p129 = por %p127, %p128
    %p130 = scmp.ne.s32.totalorder %s122, %s124
    %p131 = scmp.eq.s32.totalorder %s16, 1
    %p132 = por %p130, %p131
    %p133 = scmp.ne.s32.totalorder %s124, %s125
    %p134 = scmp.eq.s32.totalorder %s16, 0
    %p135 = por %p133, %p134
    %p136 = scmp.ne.s32.totalorder %s124, %s125
    %p137 = scmp.eq.s32.totalorder %s17, 1
    %p138 = por %p136, %p137
    %p140 = scmp.ne.s32.totalorder %s125, %s139
    %p141 = scmp.eq.s32.totalorder %s17, 0
    %p142 = por %p140, %p141
    %p143 = scmp.le.s32.totalorder 1, %s11
    %p144 = scmp.lt.s32.totalorder %s11, 3
    %p145 = pnand %p143, %p144
    %p146 = pneg %p145
    // Predicated region
    $region9: #{tpu_custom_call.1} parent=5 // pred_check
      _
    $region10: #{tpu_custom_call.1} parent=5 // pred_check_branch
      %148 = sbr.rel (%p145) target = $region12
    $region11: #{tpu_custom_call.1} parent=5 // pred_region
      %s149 = ssub.s32 %s11, 1
      // Predicated region
      $region13: #{tpu_custom_call.1} parent=11 // pred_check
        %p150 = pneg %p72
      $region14: #{tpu_custom_call.1} parent=11 // pred_check_branch
        %152 = sbr.rel (%p150) target = $region16
      $region15: #{tpu_custom_call.1} parent=11 // pred_region
        _
      $region16: #{tpu_custom_call.1} parent=11 // pred_fallthru
        _
      // Predicated region
      $region17: #{tpu_custom_call.1} parent=11 // pred_check
        %p153 = pneg %p93
      $region18: #{tpu_custom_call.1} parent=11 // pred_check_branch
        %155 = sbr.rel (%p153) target = $region20
      $region19: #{tpu_custom_call.1} parent=11 // pred_region
        _
      $region20: #{tpu_custom_call.1} parent=11 // pred_fallthru
        _
    $region12: #{tpu_custom_call.1} parent=5 // pred_fallthru
      _
    %p156 = scmp.lt.s32.totalorder %s11, 2
    // Predicated region
    $region21: #{tpu_custom_call.1} parent=5 // pred_check
      %p157 = pneg %p156
    $region22: #{tpu_custom_call.1} parent=5 // pred_check_branch
      %159 = sbr.rel (%p157) target = $region24
    $region23: #{tpu_custom_call.1} parent=5 // pred_region
      // Predicated region
      $region25: #{tpu_custom_call.1} parent=23 // pred_check
        %p160 = pneg %p45
      $region26: #{tpu_custom_call.1} parent=23 // pred_check_branch
        %162 = sbr.rel (%p160) target = $region28
      $region27: #{tpu_custom_call.1} parent=23 // pred_region
        %p163 = scmp.lt.s32.totalorder %s18, 1
        %s164 = scalar_select %p163, %s18, 1
        %p165 = scmp.lt.s32.totalorder %s19, 0
        %s166 = scalar_select %p165, %s19, 0
        %s167 = sadd.s32 %s166, %s164
        %s168 = smul.addr %s167, 4
        %s169 = scalar_lea.vmem %s0, %s168
      $region28: #{tpu_custom_call.1} parent=23 // pred_fallthru
        _
    $region24: #{tpu_custom_call.1} parent=5 // pred_fallthru
      _
    %p170 = scmp.le.s32.totalorder 1, %s11
    %p171 = scmp.lt.s32.totalorder %s11, 3
    %p172 = pnand %p170, %p171
    %p173 = pneg %p172
    // Predicated region
    $region29: #{tpu_custom_call.1} parent=5 // pred_check
      _
    $region30: #{tpu_custom_call.1} parent=5 // pred_check_branch
      %175 = sbr.rel (%p172) target = $region32
    $region31: #{tpu_custom_call.1} parent=5 // pred_region
      %s176 = ssub.s32 %s11, 1
      %p177 = scmp.lt.s32.totalorder %s20, 1
      %s178 = scalar_select %p177, %s20, 1
      %p179 = scmp.lt.s32.totalorder %s21, 0
      %s180 = scalar_select %p179, %s21, 0
      %s181 = sadd.s32 %s180, %s178
      %s182 = smul.addr %s181, 4
      %s183 = scalar_lea.vmem %s0, %s182
      %p184 = pneg %p51
      %p185 = pneg %p48
      %p186 = pneg %p72
      %p187 = pneg %p69
      %p188 = pneg %p93
      %p189 = pneg %p90
      %p190 = pneg %p114
      %p191 = pneg %p111
      %p192 = pneg %p135
      %p193 = pneg %p132
      %p194 = scmp.lt.s32.totalorder %s20, 1
      %s195 = scalar_select %p194, %s20, 1
      %p196 = scmp.lt.s32.totalorder %s21, 0
      %s197 = scalar_select %p196, %s21, 0
      %s198 = sadd.s32 %s197, %s195
      %s199 = smul.addr %s198, 4
      %s200 = scalar_lea.vmem %s0, %s199
      %p201 = scmp.eq.s32.totalorder %s20, 0
      %p202 = scmp.eq.s32.totalorder %s21, 0
      %p203 = pnand %p201, %p202
      %p204 = pneg %p203
      // Predicated region
      $region33: #{tpu_custom_call.1} parent=31 // pred_check
        _
      $region34: #{tpu_custom_call.1} parent=31 // pred_check_branch
        %206 = sbr.rel (%p203) target = $region36
      $region35: #{tpu_custom_call.1} parent=31 // pred_region
        %vm207 = vcmask 7168
        %208 = vst.msk [vmem:[%s3] sm:$0xff] %vm207, 0.0
        %209 = vst.msk [vmem:[%s4] sm:$0xff] %vm207, 0.0
      $region36: #{tpu_custom_call.1} parent=31 // pred_fallthru
        _
      %v210 = vld [vmem:[%s200] sm:$0xf]
      %v211 = vld [vmem:[%s1] sm:$0xff]
      %s212 = scalar_lea.vmem %s1, 8
      %v213 = vld [vmem:[%s212] sm:$0xff]
      %215 = vrot.lane.b32.xlu0 %v210, 127
      %v216 = vpop.permute.xlu0 %215
      %vm217 = vcmask 31744
      %v219 = vsel %vm217, %v213, 0
      %vm221 = vcmask 1043456
      %v222 = vsel %vm221, %v216, 0
      %224 = vmatprep.subr.mxu0 0.0
      %225 = vmatpush1.msra.mxu0 0.0
      %226 = vmatprep.subr.mxu0 0.0
      %227 = vmatpush1.msra.mxu0 0.0
      %228 = vmatprep.subr.mxu0 0.0
      %229 = vmatpush1.msra.mxu0 0.0
      %230 = vmatprep.subr.mxu0 0.0
      %231 = vmatpush1.msra.mxu0 0.0
      %232 = vmatprep.subr.mxu0 0.0
      %233 = vmatpush1.msra.mxu0 0.0
      %234 = vmatprep.subr.mxu0 0.0
      %235 = vmatpush1.msra.mxu0 0.0
      %236 = vmatprep.subr.mxu0 0.0
      %237 = vmatpush1.msra.mxu0 0.0
      %238 = vmatprep.subr.mxu0 0.0
      %239 = vmatpush1.msra.mxu0 0.0
      %240 = vmatprep.subr.mxu0 0.0
      %241 = vmatpush1.msra.mxu0 0.0
      %242 = vmatprep.subr.mxu0 0.0
      %243 = vmatpush1.msra.mxu0 0.0
      %244 = vmatprep.subr.mxu0 0.0
      %245 = vmatpush1.msra.mxu0 0.0
      %246 = vmatprep.subr.mxu0 0.0
      %247 = vmatpush1.msra.mxu0 0.0
      %248 = vmatprep.subr.mxu0 0.0
      %249 = vmatpush1.msra.mxu0 0.0
      %250 = vmatprep.subr.mxu0 0.0
      %251 = vmatpush1.msra.mxu0 0.0
      %252 = vmatprep.subr.mxu0 0.0
      %253 = vmatpush1.msra.mxu0 0.0
      %254 = vmatprep.subr.mxu0 0.0
      %255 = vmatpush1.msra.mxu0 %v222
      %256 = vmatprep.subr.mxu0 0.0
      %257 = vmatpush2.msra.mxu0 0.0
      %258 = vmatprep.subr.mxu0 0.0
      %259 = vmatpush2.msra.mxu0 0.0
      %260 = vmatprep.subr.mxu0 0.0
      %261 = vmatpush2.msra.mxu0 0.0
      %262 = vmatprep.subr.mxu0 0.0
      %263 = vmatpush2.msra.mxu0 0.0
      %264 = vmatprep.subr.mxu0 0.0
      %265 = vmatpush2.msra.mxu0 0.0
      %266 = vmatprep.subr.mxu0 0.0
      %267 = vmatpush2.msra.mxu0 0.0
      %268 = vmatprep.subr.mxu0 0.0
      %269 = vmatpush2.msra.mxu0 0.0
      %270 = vmatprep.subr.mxu0 0.0
      %271 = vmatpush2.msra.mxu0 0.0
      %272 = vmatprep.subr.mxu0 0.0
      %273 = vmatpush2.msra.mxu0 0.0
      %274 = vmatprep.subr.mxu0 0.0
      %275 = vmatpush2.msra.mxu0 0.0
      %276 = vmatprep.subr.mxu0 0.0
      %277 = vmatpush2.msra.mxu0 0.0
      %278 = vmatprep.subr.mxu0 0.0
      %279 = vmatpush2.msra.mxu0 0.0
      %280 = vmatprep.subr.mxu0 0.0
      %281 = vmatpush2.msra.mxu0 0.0
      %282 = vmatprep.subr.mxu0 0.0
      %283 = vmatpush2.msra.mxu0 0.0
      %284 = vmatprep.subr.mxu0 0.0
      %285 = vmatpush2.msra.mxu0 0.0
      %286 = vmatprep.subr.mxu0 0.0
      %287 = vmatpush2.msra.mxu0 0.0
      %288 = vmatprep.mubr.f32.mxu0 0.0
      %289 = vmatmul.mubr.f32.gmra.mxu0 %v219
      %v290 = vpop.f32.mrf.mxu0
      %v291 = vadd.f32 0.0, %v290
      %v292 = vpop.f32.mrf.mxu0
      %293 = vdwg.mxu0
      %v295 = vsel %vm217, %v211, 0
      %v297 = vsel %vm221, %v210, 0
      %299 = vmatprep.subr.mxu0 0.0
      %300 = vmatpush1.msra.mxu0 0.0
      %301 = vmatprep.subr.mxu0 0.0
      %302 = vmatpush1.msra.mxu0 0.0
      %303 = vmatprep.subr.mxu0 0.0
      %304 = vmatpush1.msra.mxu0 0.0
      %305 = vmatprep.subr.mxu0 0.0
      %306 = vmatpush1.msra.mxu0 0.0
      %307 = vmatprep.subr.mxu0 0.0
      %308 = vmatpush1.msra.mxu0 0.0
      %309 = vmatprep.subr.mxu0 0.0
      %310 = vmatpush1.msra.mxu0 0.0
      %311 = vmatprep.subr.mxu0 0.0
      %312 = vmatpush1.msra.mxu0 0.0
      %313 = vmatprep.subr.mxu0 0.0
      %314 = vmatpush1.msra.mxu0 0.0
      %315 = vmatprep.subr.mxu0 0.0
      %316 = vmatpush1.msra.mxu0 0.0
      %317 = vmatprep.subr.mxu0 0.0
      %318 = vmatpush1.msra.mxu0 0.0
      %319 = vmatprep.subr.mxu0 0.0
      %320 = vmatpush1.msra.mxu0 0.0
      %321 = vmatprep.subr.mxu0 0.0
      %322 = vmatpush1.msra.mxu0 0.0
      %323 = vmatprep.subr.mxu0 0.0
      %324 = vmatpush1.msra.mxu0 0.0
      %325 = vmatprep.subr.mxu0 0.0
      %326 = vmatpush1.msra.mxu0 0.0
      %327 = vmatprep.subr.mxu0 0.0
      %328 = vmatpush1.msra.mxu0 0.0
      %329 = vmatprep.subr.mxu0 0.0
      %330 = vmatpush1.msra.mxu0 %v297
      %331 = vmatprep.subr.mxu0 0.0
      %332 = vmatpush2.msra.mxu0 0.0
      %333 = vmatprep.subr.mxu0 0.0
      %334 = vmatpush2.msra.mxu0 0.0
      %335 = vmatprep.subr.mxu0 0.0
      %336 = vmatpush2.msra.mxu0 0.0
      %337 = vmatprep.subr.mxu0 0.0
      %338 = vmatpush2.msra.mxu0 0.0
      %339 = vmatprep.subr.mxu0 0.0
      %340 = vmatpush2.msra.mxu0 0.0
      %341 = vmatprep.subr.mxu0 0.0
      %342 = vmatpush2.msra.mxu0 0.0
      %343 = vmatprep.subr.mxu0 0.0
      %344 = vmatpush2.msra.mxu0 0.0
      %345 = vmatprep.subr.mxu0 0.0
      %346 = vmatpush2.msra.mxu0 0.0
      %347 = vmatprep.subr.mxu0 0.0
      %348 = vmatpush2.msra.mxu0 0.0
      %349 = vmatprep.subr.mxu0 0.0
      %350 = vmatpush2.msra.mxu0 0.0
      %351 = vmatprep.subr.mxu0 0.0
      %352 = vmatpush2.msra.mxu0 0.0
      %353 = vmatprep.subr.mxu0 0.0
      %354 = vmatpush2.msra.mxu0 0.0
      %355 = vmatprep.subr.mxu0 0.0
      %356 = vmatpush2.msra.mxu0 0.0
      %357 = vmatprep.subr.mxu0 0.0
      %358 = vmatpush2.msra.mxu0 0.0
      %359 = vmatprep.subr.mxu0 0.0
      %360 = vmatpush2.msra.mxu0 0.0
      %361 = vmatprep.subr.mxu0 0.0
      %362 = vmatpush2.msra.mxu0 0.0
      %363 = vmatprep.mubr.f32.mxu0 0.0
      %364 = vmatmul.mubr.f32.gmra.mxu0 %v295
      %v365 = vpop.f32.mrf.mxu0
      %v366 = vadd.f32 %v291, %v365
      %v367 = vpop.f32.mrf.mxu0
      %368 = vdwg.mxu0
      %s369 = scalar_lea.vmem %s1, 16
      %v370 = vld [vmem:[%s369] sm:$0xff]
      %371 = vrot.lane.b32.xlu0 %v210, 126
      %v372 = vpop.permute.xlu0 %371
      %v374 = vsel %vm217, %v370, 0
      %v376 = vsel %vm221, %v372, 0
      %378 = vmatprep.subr.mxu0 0.0
      %379 = vmatpush1.msra.mxu0 0.0
      %380 = vmatprep.subr.mxu0 0.0
      %381 = vmatpush1.msra.mxu0 0.0
      %382 = vmatprep.subr.mxu0 0.0
      %383 = vmatpush1.msra.mxu0 0.0
      %384 = vmatprep.subr.mxu0 0.0
      %385 = vmatpush1.msra.mxu0 0.0
      %386 = vmatprep.subr.mxu0 0.0
      %387 = vmatpush1.msra.mxu0 0.0
      %388 = vmatprep.subr.mxu0 0.0
      %389 = vmatpush1.msra.mxu0 0.0
      %390 = vmatprep.subr.mxu0 0.0
      %391 = vmatpush1.msra.mxu0 0.0
      %392 = vmatprep.subr.mxu0 0.0
      %393 = vmatpush1.msra.mxu0 0.0
      %394 = vmatprep.subr.mxu0 0.0
      %395 = vmatpush1.msra.mxu0 0.0
      %396 = vmatprep.subr.mxu0 0.0
      %397 = vmatpush1.msra.mxu0 0.0
      %398 = vmatprep.subr.mxu0 0.0
      %399 = vmatpush1.msra.mxu0 0.0
      %400 = vmatprep.subr.mxu0 0.0
      %401 = vmatpush1.msra.mxu0 0.0
      %402 = vmatprep.subr.mxu0 0.0
      %403 = vmatpush1.msra.mxu0 0.0
      %404 = vmatprep.subr.mxu0 0.0
      %405 = vmatpush1.msra.mxu0 0.0
      %406 = vmatprep.subr.mxu0 0.0
      %407 = vmatpush1.msra.mxu0 0.0
      %408 = vmatprep.subr.mxu0 0.0
      %409 = vmatpush1.msra.mxu0 %v376
      %410 = vmatprep.subr.mxu0 0.0
      %411 = vmatpush2.msra.mxu0 0.0
      %412 = vmatprep.subr.mxu0 0.0
      %413 = vmatpush2.msra.mxu0 0.0
      %414 = vmatprep.subr.mxu0 0.0
      %415 = vmatpush2.msra.mxu0 0.0
      %416 = vmatprep.subr.mxu0 0.0
      %417 = vmatpush2.msra.mxu0 0.0
      %418 = vmatprep.subr.mxu0 0.0
      %419 = vmatpush2.msra.mxu0 0.0
      %420 = vmatprep.subr.mxu0 0.0
      %421 = vmatpush2.msra.mxu0 0.0
      %422 = vmatprep.subr.mxu0 0.0
      %423 = vmatpush2.msra.mxu0 0.0
      %424 = vmatprep.subr.mxu0 0.0
      %425 = vmatpush2.msra.mxu0 0.0
      %426 = vmatprep.subr.mxu0 0.0
      %427 = vmatpush2.msra.mxu0 0.0
      %428 = vmatprep.subr.mxu0 0.0
      %429 = vmatpush2.msra.mxu0 0.0
      %430 = vmatprep.subr.mxu0 0.0
      %431 = vmatpush2.msra.mxu0 0.0
      %432 = vmatprep.subr.mxu0 0.0
      %433 = vmatpush2.msra.mxu0 0.0
      %434 = vmatprep.subr.mxu0 0.0
      %435 = vmatpush2.msra.mxu0 0.0
      %436 = vmatprep.subr.mxu0 0.0
      %437 = vmatpush2.msra.mxu0 0.0
      %438 = vmatprep.subr.mxu0 0.0
      %439 = vmatpush2.msra.mxu0 0.0
      %440 = vmatprep.subr.mxu0 0.0
      %441 = vmatpush2.msra.mxu0 0.0
      %442 = vmatprep.mubr.f32.mxu0 0.0
      %443 = vmatmul.mubr.f32.gmra.mxu0 %v374
      %v444 = vpop.f32.mrf.mxu0
      %v445 = vadd.f32 0.0, %v444
      %v446 = vpop.f32.mrf.mxu0
      %447 = vdwg.mxu0
      %v448 = vadd.f32 %v366, %v445
      %v449 = vld [vmem:[%s2] sm:$0xff]
      %451 = vset.pattern.permute.xlu0 0
      %452 = vperm.xlu0 %451, %v449
      %v453 = vpop.permute.xlu0 %452
      %v455 = vadd.f32 %v448, %v453
      %v456 = vlaneseq
      %v457 = vand.u32 %v456, 127
      %s458 = smul.u32 %s21, 16
      %v459 = vstv %s458
      %v460 = vadd.s32 %v457, %v459
      %vm461 = vcmp.lt.s32.totalorder %v460, 16
      %v462 = vsel %vm461, 1, 0
      %v463 = vcvt.s32.f32 %v462
      %v464 = vmul.f32 %v455, %v463
      %v465 = vld [vmem:[%s3] sm:$0xff]
      %vm466 = vcmask 130048
      %v467 = vsel %vm466, %v464, 0.0
      %468 = vadd.xlane.f32.xlu0 %v467
      %v469 = vpop.xlane.xlu0 %468
      %v470 = vadd.f32 %v465, %v469
      %vm471 = vcmask 7168
      %472 = vst.msk [vmem:[%s3] sm:$0xff] %vm471, %v470
      %v473 = vld [vmem:[%s4] sm:$0xff]
      %v474 = vmul.f32 %v464, %v464
      %v475 = vsel %vm466, %v474, 0.0
      %476 = vadd.xlane.f32.xlu0 %v475
      %v477 = vpop.xlane.xlu0 %476
      %v478 = vadd.f32 %v473, %v477
      %479 = vst.msk [vmem:[%s4] sm:$0xff] %vm471, %v478
      // Predicated region
      $region37: #{tpu_custom_call.1} parent=31 // pred_check
        %p480 = pneg %p111
      $region38: #{tpu_custom_call.1} parent=31 // pred_check_branch
        %482 = sbr.rel (%p480) target = $region40
      $region39: #{tpu_custom_call.1} parent=31 // pred_region
        _
      $region40: #{tpu_custom_call.1} parent=31 // pred_fallthru
        _
      // Predicated region
      $region41: #{tpu_custom_call.1} parent=31 // pred_check
        %p483 = pneg %p132
      $region42: #{tpu_custom_call.1} parent=31 // pred_check_branch
        %485 = sbr.rel (%p483) target = $region44
      $region43: #{tpu_custom_call.1} parent=31 // pred_region
        _
      $region44: #{tpu_custom_call.1} parent=31 // pred_fallthru
        _
      // Predicated region
      $region45: #{tpu_custom_call.1} parent=31 // pred_check
        %p486 = pneg %p111
      $region46: #{tpu_custom_call.1} parent=31 // pred_check_branch
        %488 = sbr.rel (%p486) target = $region48
      $region47: #{tpu_custom_call.1} parent=31 // pred_region
        _
      $region48: #{tpu_custom_call.1} parent=31 // pred_fallthru
        _
      // Predicated region
      $region49: #{tpu_custom_call.1} parent=31 // pred_check
        %p489 = pneg %p132
      $region50: #{tpu_custom_call.1} parent=31 // pred_check_branch
        %491 = sbr.rel (%p489) target = $region52
      $region51: #{tpu_custom_call.1} parent=31 // pred_region
        _
      $region52: #{tpu_custom_call.1} parent=31 // pred_fallthru
        _
    $region32: #{tpu_custom_call.1} parent=5 // pred_fallthru
      _
    %p492 = scmp.le.s32.totalorder 2, %s11
    // Predicated region
    $region53: #{tpu_custom_call.1} parent=5 // pred_check
      %p493 = pneg %p492
    $region54: #{tpu_custom_call.1} parent=5 // pred_check_branch
      %495 = sbr.rel (%p493) target = $region56
    $region55: #{tpu_custom_call.1} parent=5 // pred_region
      %s496 = ssub.s32 %s11, 2
    $region56: #{tpu_custom_call.1} parent=5 // pred_fallthru
      _
  $region6: #{tpu_custom_call.1} parent=0 // loop_footer
    %s15 = sadd.s32 1, %s11
  $region7: #{tpu_custom_call.1} parent=0 // loop_footer_branch
    %10 = sbr.rel target = $region3
  $region8: #{tpu_custom_call.1} parent=0 // loop_exit
    _

</llo_original>
